<compile_context>
chip_gen: v6e
topology: v6e:2x2x1
jax: 0.10.0
libtpu: 0.0.40
codegen_flags: <defaults>
</compile_context>

<pallas_src>
import jax
import jax.numpy as jnp
from jax.experimental import pallas as pl
from jax.experimental.pallas import tpu as pltpu

EPS = 1e-8
CANCEL_RATE_EVAL = 0.05
ACCEPT_RATE_EVAL = 0.75
LANE = 128
N_MISC = 11  # 2 log-cancel lanes + 9 per-batch partial-sum lanes


def _field_offsets(C, T, lane=LANE):
    ru = lambda n: -(-n // lane) * lane
    off_cat = 0
    off_inv = ru(C)
    off_coll = off_inv + ru(T)
    off_pc = off_coll + ru(T)
    width = off_pc + lane
    return off_cat, off_inv, off_coll, off_pc, width


def _build_kernel(C, T, lane=LANE):
    off_cat, off_inv, off_coll, off_pc, _ = _field_offsets(C, T, lane)

    def kernel(packed_ref, fused_ref, out_ref):
        f32 = jnp.float32
        cat = packed_ref[:, off_cat:off_cat + C]                  # (B, C)
        inv_count = packed_ref[:, off_inv:off_inv + T]            # (B, T)
        accept_prob_coll = packed_ref[:, off_coll:off_coll + T]   # cumsum(coll) from wrapper
        pc = packed_ref[:, off_pc:off_pc + 2]                     # (B, 2)
        price = pc[:, 0:1]
        cancel = pc[:, 1:2]
        B = cat.shape[0]

        # --- single fused MXU pass for all three category projections ---
        fused_b = jnp.dot(cat, fused_ref[...], preferred_element_type=f32)  # (B, 3T)
        inv_dist_b = fused_b[:, 0:T]             # mm(category, poisson + eps)
        bel_cancel_bxt = fused_b[:, T:2 * T]     # belief cancel rate
        accept_params_b = fused_b[:, 2 * T:3 * T]  # cumsum'd threshold params
        inv_dist_b_eps = inv_dist_b + EPS

        # --- collection-threshold cumsum path ---
        reject_prob_coll = 1.0 - accept_prob_coll
        accept_pct_b = jnp.sum(accept_prob_coll * inv_dist_b_eps,
                               axis=1, keepdims=True)             # (B, 1)
        reject_pct_b = 1.0 - accept_pct_b
        batch_total_demand_b = 1.0 / accept_pct_b                 # exact; ref has no EPS guard
        trunc_orders_dist = (reject_prob_coll * inv_dist_b_eps) / (reject_pct_b + EPS)
        trunc_demand = (batch_total_demand_b - 1.0) * trunc_orders_dist

        # --- arrival probability (CumSumNoGrad path; exact normalisation, no EPS
        #     in the denominator, matching the PyTorch reference) ---
        arrival_un = inv_dist_b * (accept_prob_coll + EPS)
        arrival = arrival_un / jnp.sum(arrival_un, axis=1, keepdims=True)
        log_arrival = jnp.log(arrival + EPS)

        # --- cancel beliefs ---
        bel_fill_bxt = 1.0 - bel_cancel_bxt
        bel_cancel_b = jnp.sum(bel_cancel_bxt * inv_count, axis=1, keepdims=True)
        bel_fill_b = 1.0 - bel_cancel_b

        # --- accept probability from threshold parameters ---
        trunc_accept = trunc_demand * accept_params_b
        trunc_cancel = trunc_accept * bel_cancel_bxt
        trunc_fill = trunc_accept * bel_fill_bxt
        fill = 1.0 - cancel
        inv_x_accept = inv_count * accept_params_b

        # per-batch (lane) partial sums; cross-batch reduction happens in host glue
        ta_b = jnp.sum(trunc_accept, axis=1, keepdims=True)
        tc_b = jnp.sum(trunc_cancel, axis=1, keepdims=True)
        tf_b = jnp.sum(trunc_fill, axis=1, keepdims=True)
        ba_b = jnp.sum(inv_x_accept, axis=1, keepdims=True)
        bc_b = jnp.sum(cancel * inv_x_accept, axis=1, keepdims=True)
        bf_b = jnp.sum(fill * inv_x_accept, axis=1, keepdims=True)

        misc = jnp.concatenate(
            [jnp.log(bel_fill_b + EPS), jnp.log(bel_cancel_b + EPS),   # lanes 0-1
             price * tf_b, tc_b, tf_b, ta_b,                           # lanes 2-5
             price * bf_b, bc_b, bf_b, ba_b,                           # lanes 6-9
             batch_total_demand_b,                                     # lane 10
             jnp.zeros((B, lane - N_MISC), f32)], axis=1)              # pad to 128

        # single lane-dense store for the whole output block
        out_ref[...] = jnp.concatenate([arrival, log_arrival, misc], axis=1)

    return kernel


def _poisson_cxt(lam, T):
    # lam^t / t! * exp(-lam) for integer thresholds t = 0..T-1.
    # Mathematically identical to LamToverTFactorial(...) * exp(-lam_matrix).
    t = jnp.arange(T, dtype=jnp.float32)
    log_fact = jax.scipy.special.gammaln(t + 1.0)
    return jnp.exp(t[None, :] * jnp.log(lam)[:, None]
                   - log_fact[None, :] - lam[:, None])


def _cancel_rate_belief_cxt(coef, intercept, T):
    t = jnp.arange(T, dtype=jnp.float32)
    z = intercept[:, None] + t[None, :] * coef[:, None]
    return 1.0 - 1.0 / (1.0 + jnp.exp(z))


def precompute_param_matrices(params, T, B):
    """Parameter-only precompute.  Cache/reuse while params are unchanged."""
    inv_raw_est = _poisson_cxt(params["inventory_lam_est"], T) + EPS
    coef_neg_est = jnp.minimum(params["cancel_coef_est"], 0.0)
    bel_cancel_cxt_est = _cancel_rate_belief_cxt(
        coef_neg_est, params["cancel_intercept_est"], T)
    thr = params["thresholds_raw_matrix"]
    thr_norm = thr / jnp.sum(thr, axis=1, keepdims=True)
    accept_prob_cxt = jnp.cumsum(thr_norm, axis=1)
    fused_cxt = jnp.concatenate(
        [inv_raw_est, bel_cancel_cxt_est, accept_prob_cxt], axis=1
    ).astype(jnp.float32)                                               # (C, 3T)
    C = fused_cxt.shape[0]
    log_category_prob = jnp.broadcast_to(
        jnp.log(params["demand_distribution_est"] + EPS)[None, :], (B, C)
    ).astype(jnp.float32)
    return fused_cxt, log_category_prob


def safetynet_v46_forward(params, category, inv_count, price, cancel,
                          collection_thresholds, precomputed=None):
    f32 = jnp.float32
    B, C = category.shape
    T = collection_thresholds.shape[1]

    if precomputed is None:
        precomputed = precompute_param_matrices(params, T, B)
    fused_cxt, log_category_prob = precomputed

    off_cat, off_inv, off_coll, off_pc, width = _field_offsets(C, T)

    # one host-side pack fusion: [category | inv_count | cumsum(coll) | price,cancel]
    packed = jnp.zeros((B, width), f32)
    packed = packed.at[:, off_cat:off_cat + C].set(category.astype(f32))
    packed = packed.at[:, off_inv:off_inv + T].set(inv_count.astype(f32))
    packed = packed.at[:, off_coll:off_coll + T].set(
        jnp.cumsum(collection_thresholds.astype(f32), axis=1))
    packed = packed.at[:, off_pc:off_pc + 2].set(
        jnp.stack([price.astype(f32), cancel.astype(f32)], axis=1))

    BT = 8 if (B % 8 == 0) else B          # batch rows per grid step
    out_width = 2 * T + LANE

    out = pl.pallas_call(
        _build_kernel(C, T),
        grid=(B // BT,),
        in_specs=[
            pl.BlockSpec((BT, width), lambda i: (i, 0)),
            pl.BlockSpec((C, 3 * T), lambda i: (0, 0)),
        ],
        out_specs=pl.BlockSpec((BT, out_width), lambda i: (i, 0)),
        out_shape=jax.ShapeDtypeStruct((B, out_width), f32),
        compiler_params=pltpu.CompilerParams(
            dimension_semantics=("parallel",)),   # micro-batch blocks -> v7x megacore
    )(packed, fused_cxt)

    arrival = out[:, 0:T]
    log_arrival = out[:, T:2 * T]
    log_cancel_prob = out[:, 2 * T:2 * T + 2]
    sums = jnp.sum(out[:, 2 * T + 2:2 * T + N_MISC], axis=0)   # (9,) cross-batch sum
    (trunc_rev, trunc_cancel_sum, trunc_fill_sum, trunc_accept_sum,
     batch_rev, batch_cancel_sum, batch_fill_sum, batch_accept_sum,
     estimated_batch_total_demand) = [sums[i] for i in range(9)]

    new_objective_loss = -(1.0 / 50000.0) * (trunc_rev + batch_rev)
    new_cancel_constraint_loss = (trunc_cancel_sum + batch_cancel_sum
                                  - (trunc_accept_sum + batch_accept_sum) * CANCEL_RATE_EVAL)
    new_accept_constraint_loss = (1.0 / 7.0) * (
        (trunc_accept_sum + batch_accept_sum) * ACCEPT_RATE_EVAL
        - trunc_fill_sum - batch_fill_sum)
    observed_cancel_constraint_loss = batch_cancel_sum - batch_accept_sum * CANCEL_RATE_EVAL
    observed_accept_constraint_loss = (1.0 / 7.0) * (
        batch_accept_sum * ACCEPT_RATE_EVAL - batch_fill_sum)
    lp_infeasible = 0
    # TODO(synk): parametric_knapsack=True branch (QPFunctionJK LP solve) not implemented.

    return (new_objective_loss, new_cancel_constraint_loss,
            new_accept_constraint_loss, arrival, log_arrival, log_cancel_prob,
            log_category_prob, estimated_batch_total_demand,
            observed_cancel_constraint_loss, observed_accept_constraint_loss,
            lp_infeasible)


if __name__ == "__main__":
    B, C, T = 8, 8, 128  # batch, nKnapsackCategories, nThresholds

    key = jax.random.PRNGKey(0)
    k1, k2, k3, k4, k5, k6 = jax.random.split(key, 6)

    # deterministic parameter init (module __init__ defaults)
    params = {
        "thresholds_raw_matrix": jax.random.uniform(k1, (C, T), jnp.float32,
                                                    0.1, 1.0),     # starting_thresholds
        "inventory_lam_est": jnp.ones((C,), jnp.float32) * 3.0,     # inventory_initializer
        "cancel_coef_est": jnp.ones((C,), jnp.float32) * (-0.2),
        "cancel_intercept_est": jnp.ones((C,), jnp.float32) * 0.3,
        "prices_est": jnp.ones((C,), jnp.float32),
        "demand_distribution_est": jnp.ones((C,), jnp.float32) / C,
    }

    # deterministic example inputs
    category = jax.nn.one_hot(jax.random.randint(k2, (B,), 0, C), C,
                              dtype=jnp.float32)
    inv_count = jax.nn.one_hot(jax.random.randint(k3, (B,), 0, T), T,
                               dtype=jnp.float32)
    price = jax.random.uniform(k4, (B,), jnp.float32, 0.5, 2.0)
    cancel = jax.random.bernoulli(k5, 0.2, (B,)).astype(jnp.float32)
    coll_raw = jax.random.uniform(k6, (B, T), jnp.float32, 0.1, 1.0)
    collection_thresholds = coll_raw / jnp.sum(coll_raw, axis=1, keepdims=True)

    # hoisted, cacheable parameter-only precompute (fused (C,3T) + log_category_prob)
    precomputed = precompute_param_matrices(params, T, B)

    fwd = jax.jit(safetynet_v46_forward)
    outs = fwd(params, category, inv_count, price, cancel,
               collection_thresholds, precomputed=precomputed)
    jax.block_until_ready([o for o in outs if isinstance(o, jax.Array)])
    print("KERNEL_OK")
</pallas_src>

<mosaic_0001>
module attributes {stable_mosaic.version = 11 : i64} {
  func.func @kernel(%arg0: i32, %arg1: memref<8x512xf32, #tpu.memory_space<vmem>>, %arg2: memref<8x384xf32, #tpu.memory_space<vmem>>, %arg3: memref<8x384xf32, #tpu.memory_space<vmem>>) attributes {dimension_semantics = [#tpu.dimension_semantics<parallel>], iteration_bounds = array<i64: 1>, scalar_prefetch = 0 : i64, scratch_operands = 0 : i64, tpu.core_type = #tpu.core_type<tc>, window_params = [{transform_indices = @transform_0, window_bounds = array<i64: 8, 512>}, {pipeline_mode = #tpu.pipeline_mode<synchronous>, transform_indices = @transform_1, window_bounds = array<i64: 8, 384>}, {transform_indices = @transform_2, window_bounds = array<i64: 8, 384>}]} {
    %c0 = arith.constant 0 : index
    %c0_0 = arith.constant 0 : index
    %0 = vector.load %arg1[%c0, %c0_0] : memref<8x512xf32, #tpu.memory_space<vmem>>, vector<8x8xf32>
    %c0_1 = arith.constant 0 : index
    %c128 = arith.constant 128 : index
    %1 = vector.load %arg1[%c0_1, %c128] : memref<8x512xf32, #tpu.memory_space<vmem>>, vector<8x128xf32>
    %c0_2 = arith.constant 0 : index
    %c256 = arith.constant 256 : index
    %2 = vector.load %arg1[%c0_2, %c256] : memref<8x512xf32, #tpu.memory_space<vmem>>, vector<8x128xf32>
    %c0_3 = arith.constant 0 : index
    %c384 = arith.constant 384 : index
    %3 = vector.load %arg1[%c0_3, %c384] : memref<8x512xf32, #tpu.memory_space<vmem>>, vector<8x2xf32>
    %4 = vector.extract_strided_slice %3 {offsets = [0, 0], sizes = [8, 1], strides = [1, 1]} : vector<8x2xf32> to vector<8x1xf32>
    %5 = vector.extract_strided_slice %3 {offsets = [0, 1], sizes = [8, 1], strides = [1, 1]} : vector<8x2xf32> to vector<8x1xf32>
    %c0_4 = arith.constant 0 : index
    %c0_5 = arith.constant 0 : index
    %6 = vector.load %arg2[%c0_4, %c0_5] : memref<8x384xf32, #tpu.memory_space<vmem>>, vector<8x384xf32>
    %cst = arith.constant dense<0.000000e+00> : vector<8x384xf32>
    %7 = tpu.matmul %0, %6, %cst {dimension_numbers = #tpu.dot_dimension_numbers<[1], [0], [0], [1], [0, 0, 1, 1], [], []>} : vector<8x8xf32>, vector<8x384xf32>, vector<8x384xf32> -> vector<8x384xf32>
    %8 = vector.extract_strided_slice %7 {offsets = [0, 0], sizes = [8, 128], strides = [1, 1]} : vector<8x384xf32> to vector<8x128xf32>
    %9 = vector.extract_strided_slice %7 {offsets = [0, 128], sizes = [8, 128], strides = [1, 1]} : vector<8x384xf32> to vector<8x128xf32>
    %10 = vector.extract_strided_slice %7 {offsets = [0, 256], sizes = [8, 128], strides = [1, 1]} : vector<8x384xf32> to vector<8x128xf32>
    %cst_6 = arith.constant 9.99999993E-9 : f32
    %11 = vector.broadcast %cst_6 : f32 to vector<8x128xf32>
    %12 = arith.addf %8, %11 : vector<8x128xf32>
    %cst_7 = arith.constant 1.000000e+00 : f32
    %13 = vector.broadcast %cst_7 : f32 to vector<8x128xf32>
    %14 = arith.subf %13, %2 : vector<8x128xf32>
    %15 = arith.mulf %2, %12 : vector<8x128xf32>
    %cst_8 = arith.constant dense<0.000000e+00> : vector<8xf32>
    %16 = vector.multi_reduction <add>, %15, %cst_8 [1] : vector<8x128xf32> to vector<8xf32>
    %17 = vector.shape_cast %16 : vector<8xf32> to vector<8x1xf32>
    %cst_9 = arith.constant 1.000000e+00 : f32
    %18 = vector.broadcast %cst_9 : f32 to vector<8x1xf32>
    %19 = arith.subf %18, %17 : vector<8x1xf32>
    %cst_10 = arith.constant 1.000000e+00 : f32
    %20 = vector.broadcast %cst_10 : f32 to vector<8x1xf32>
    %21 = arith.divf %20, %17 : vector<8x1xf32>
    %22 = arith.mulf %14, %12 : vector<8x128xf32>
    %cst_11 = arith.constant 9.99999993E-9 : f32
    %23 = vector.broadcast %cst_11 : f32 to vector<8x1xf32>
    %24 = arith.addf %19, %23 : vector<8x1xf32>
    %25 = vector.broadcast %24 : vector<8x1xf32> to vector<8x128xf32>
    %26 = arith.divf %22, %25 : vector<8x128xf32>
    %cst_12 = arith.constant 1.000000e+00 : f32
    %27 = vector.broadcast %cst_12 : f32 to vector<8x1xf32>
    %28 = arith.subf %21, %27 : vector<8x1xf32>
    %29 = vector.broadcast %28 : vector<8x1xf32> to vector<8x128xf32>
    %30 = arith.mulf %29, %26 : vector<8x128xf32>
    %cst_13 = arith.constant 9.99999993E-9 : f32
    %31 = vector.broadcast %cst_13 : f32 to vector<8x128xf32>
    %32 = arith.addf %2, %31 : vector<8x128xf32>
    %33 = arith.mulf %8, %32 : vector<8x128xf32>
    %cst_14 = arith.constant dense<0.000000e+00> : vector<8xf32>
    %34 = vector.multi_reduction <add>, %33, %cst_14 [1] : vector<8x128xf32> to vector<8xf32>
    %35 = vector.shape_cast %34 : vector<8xf32> to vector<8x1xf32>
    %36 = vector.broadcast %35 : vector<8x1xf32> to vector<8x128xf32>
    %37 = arith.divf %33, %36 : vector<8x128xf32>
    %cst_15 = arith.constant 9.99999993E-9 : f32
    %38 = vector.broadcast %cst_15 : f32 to vector<8x128xf32>
    %39 = arith.addf %37, %38 : vector<8x128xf32>
    %40 = math.log %39 : vector<8x128xf32>
    %cst_16 = arith.constant 1.000000e+00 : f32
    %41 = vector.broadcast %cst_16 : f32 to vector<8x128xf32>
    %42 = arith.subf %41, %9 : vector<8x128xf32>
    %43 = arith.mulf %9, %1 : vector<8x128xf32>
    %cst_17 = arith.constant dense<0.000000e+00> : vector<8xf32>
    %44 = vector.multi_reduction <add>, %43, %cst_17 [1] : vector<8x128xf32> to vector<8xf32>
    %45 = vector.shape_cast %44 : vector<8xf32> to vector<8x1xf32>
    %cst_18 = arith.constant 1.000000e+00 : f32
    %46 = vector.broadcast %cst_18 : f32 to vector<8x1xf32>
    %47 = arith.subf %46, %45 : vector<8x1xf32>
    %48 = arith.mulf %30, %10 : vector<8x128xf32>
    %49 = arith.mulf %48, %9 : vector<8x128xf32>
    %50 = arith.mulf %48, %42 : vector<8x128xf32>
    %cst_19 = arith.constant 1.000000e+00 : f32
    %51 = vector.broadcast %cst_19 : f32 to vector<8x1xf32>
    %52 = arith.subf %51, %5 : vector<8x1xf32>
    %53 = arith.mulf %1, %10 : vector<8x128xf32>
    %cst_20 = arith.constant dense<0.000000e+00> : vector<8xf32>
    %54 = vector.multi_reduction <add>, %48, %cst_20 [1] : vector<8x128xf32> to vector<8xf32>
    %55 = vector.shape_cast %54 : vector<8xf32> to vector<8x1xf32>
    %cst_21 = arith.constant dense<0.000000e+00> : vector<8xf32>
    %56 = vector.multi_reduction <add>, %49, %cst_21 [1] : vector<8x128xf32> to vector<8xf32>
    %57 = vector.shape_cast %56 : vector<8xf32> to vector<8x1xf32>
    %cst_22 = arith.constant dense<0.000000e+00> : vector<8xf32>
    %58 = vector.multi_reduction <add>, %50, %cst_22 [1] : vector<8x128xf32> to vector<8xf32>
    %59 = vector.shape_cast %58 : vector<8xf32> to vector<8x1xf32>
    %cst_23 = arith.constant dense<0.000000e+00> : vector<8xf32>
    %60 = vector.multi_reduction <add>, %53, %cst_23 [1] : vector<8x128xf32> to vector<8xf32>
    %61 = vector.shape_cast %60 : vector<8xf32> to vector<8x1xf32>
    %62 = vector.broadcast %5 : vector<8x1xf32> to vector<8x128xf32>
    %63 = arith.mulf %62, %53 : vector<8x128xf32>
    %cst_24 = arith.constant dense<0.000000e+00> : vector<8xf32>
    %64 = vector.multi_reduction <add>, %63, %cst_24 [1] : vector<8x128xf32> to vector<8xf32>
    %65 = vector.shape_cast %64 : vector<8xf32> to vector<8x1xf32>
    %66 = vector.broadcast %52 : vector<8x1xf32> to vector<8x128xf32>
    %67 = arith.mulf %66, %53 : vector<8x128xf32>
    %cst_25 = arith.constant dense<0.000000e+00> : vector<8xf32>
    %68 = vector.multi_reduction <add>, %67, %cst_25 [1] : vector<8x128xf32> to vector<8xf32>
    %69 = vector.shape_cast %68 : vector<8xf32> to vector<8x1xf32>
    %cst_26 = arith.constant 9.99999993E-9 : f32
    %70 = vector.broadcast %cst_26 : f32 to vector<8x1xf32>
    %71 = arith.addf %47, %70 : vector<8x1xf32>
    %72 = math.log %71 : vector<8x1xf32>
    %cst_27 = arith.constant 9.99999993E-9 : f32
    %73 = vector.broadcast %cst_27 : f32 to vector<8x1xf32>
    %74 = arith.addf %45, %73 : vector<8x1xf32>
    %75 = math.log %74 : vector<8x1xf32>
    %76 = arith.mulf %4, %59 : vector<8x1xf32>
    %77 = arith.mulf %4, %69 : vector<8x1xf32>
    %cst_28 = arith.constant 0.000000e+00 : f32
    %78 = vector.broadcast %cst_28 : f32 to vector<8x117xf32>
    %79 = tpu.concatenate %72, %75, %76, %57, %59, %55, %77, %65, %69, %61, %21, %78 in 1 : vector<8x1xf32>, vector<8x1xf32>, vector<8x1xf32>, vector<8x1xf32>, vector<8x1xf32>, vector<8x1xf32>, vector<8x1xf32>, vector<8x1xf32>, vector<8x1xf32>, vector<8x1xf32>, vector<8x1xf32>, vector<8x117xf32> -> vector<8x128xf32>
    %80 = tpu.concatenate %37, %40, %79 in 1 : vector<8x128xf32>, vector<8x128xf32>, vector<8x128xf32> -> vector<8x384xf32>
    %c0_29 = arith.constant 0 : index
    %c0_30 = arith.constant 0 : index
    %81 = vector.load %arg3[%c0_29, %c0_30] : memref<8x384xf32, #tpu.memory_space<vmem>>, vector<8x384xf32>
    tpu.vector_store %arg3[%c0_29, %c0_30], %80 {strides = array<i32>} : memref<8x384xf32, #tpu.memory_space<vmem>>, vector<8x384xf32>,
    return
  }
  func.func @transform_0(%arg0: i32) -> (i32, i32) {
    %c0_i32 = arith.constant 0 : i32
    %c0_i32_0 = arith.constant 0 : i32
    return %arg0, %c0_i32 : i32, i32
  }
  func.func @transform_1(%arg0: i32) -> (i32, i32) {
    %c0_i32 = arith.constant 0 : i32
    %c0_i32_0 = arith.constant 0 : i32
    %c0_i32_1 = arith.constant 0 : i32
    return %c0_i32, %c0_i32_0 : i32, i32
  }
  func.func @transform_2(%arg0: i32) -> (i32, i32) {
    %c0_i32 = arith.constant 0 : i32
    %c0_i32_0 = arith.constant 0 : i32
    return %arg0, %c0_i32 : i32, i32
  }
}

</mosaic_0001>

<llo_original>
// kernel: safetynet_v46_forward.1
$region0: #{safetynet_v46_forward.1}
  #allocation0 [shape = 'u32[]', space=smem, size = 0x4, offset = 0x4, fixed_abs, tag = 'smem constant byte address 0x4 - core index']
  #allocation1 [shape = 'u32[144,128]{1,0:T(1,128)}', space=vmem, size = 0x12000, scoped, tag = 'internal scratch']
  %s0 = inlined_call_operand.vmem [shape: f32[8,512], index: 0, kind: input, shape index: {}]
  %s1 = inlined_call_operand.vmem [shape: f32[8,384], index: 1, kind: input, shape index: {}]
  %s2 = inlined_call_operand.vmem [shape: f32[8,384], index: 2, kind: output, shape index: {}]
  %s3 = sld [smem:[#allocation0]]
  $region18: #{safetynet_v46_forward.1} parent=0
    _
  %s5 = ssub.s32 1, %s3
  %s6 = scalar_select 0, %s5, %s3
  // Predicated region
  $region2: #{safetynet_v46_forward.1} parent=0 // pred_check
    _
  $region3: #{safetynet_v46_forward.1} parent=0 // pred_check_branch
    %8 = sbr.rel (0) target = $region5
  $region4: #{safetynet_v46_forward.1} parent=0 // pred_region
    _
  $region5: #{safetynet_v46_forward.1} parent=0 // pred_fallthru
    _
  // Predicated region
  $region6: #{safetynet_v46_forward.1} parent=0 // pred_check
    _
  $region7: #{safetynet_v46_forward.1} parent=0 // pred_check_branch
    %10 = sbr.rel (0) target = $region9
  $region8: #{safetynet_v46_forward.1} parent=0 // pred_region
    _
  $region9: #{safetynet_v46_forward.1} parent=0 // pred_fallthru
    _
  %v11 = vld [vmem:[%s0] sm:$0xff]
  %v12 = vld [vmem:[%s0 + $0x8] sm:$0xff]
  %v13 = vld [vmem:[%s0 + $0x10] sm:$0xff]
  %v14 = vld [vmem:[%s0 + $0x18] sm:$0xff]
  %v15 = vld [vmem:[%s1] sm:$0xff]
  %v16 = vld [vmem:[%s1 + $0x8] sm:$0xff]
  %v17 = vld [vmem:[%s1 + $0x10] sm:$0xff]
  %vm18 = vcmask 64512
  %v20 = vsel %vm18, %v11, 0
  %22 = vmatprep.subr.mxu0 0.0
  %23 = vmatpush1.msra.mxu0 0.0
  %24 = vmatprep.subr.mxu0 0.0
  %25 = vmatpush1.msra.mxu0 0.0
  %26 = vmatprep.subr.mxu0 0.0
  %27 = vmatpush1.msra.mxu0 0.0
  %28 = vmatprep.subr.mxu0 0.0
  %29 = vmatpush1.msra.mxu0 0.0
  %30 = vmatprep.subr.mxu0 0.0
  %31 = vmatpush1.msra.mxu0 0.0
  %32 = vmatprep.subr.mxu0 0.0
  %33 = vmatpush1.msra.mxu0 0.0
  %34 = vmatprep.subr.mxu0 0.0
  %35 = vmatpush1.msra.mxu0 0.0
  %36 = vmatprep.subr.mxu0 0.0
  %37 = vmatpush1.msra.mxu0 0.0
  %38 = vmatprep.subr.mxu0 0.0
  %39 = vmatpush1.msra.mxu0 0.0
  %40 = vmatprep.subr.mxu0 0.0
  %41 = vmatpush1.msra.mxu0 0.0
  %42 = vmatprep.subr.mxu0 0.0
  %43 = vmatpush1.msra.mxu0 0.0
  %44 = vmatprep.subr.mxu0 0.0
  %45 = vmatpush1.msra.mxu0 0.0
  %46 = vmatprep.subr.mxu0 0.0
  %47 = vmatpush1.msra.mxu0 0.0
  %48 = vmatprep.subr.mxu0 0.0
  %49 = vmatpush1.msra.mxu0 0.0
  %50 = vmatprep.subr.mxu0 0.0
  %51 = vmatpush1.msra.mxu0 0.0
  %52 = vmatprep.subr.mxu0 %v16
  %53 = vmatpush1.msra.mxu0 %v15
  %54 = vmatprep.subr.mxu0 0.0
  %55 = vmatpush2.msra.mxu0 0.0
  %56 = vmatprep.subr.mxu0 0.0
  %57 = vmatpush2.msra.mxu0 0.0
  %58 = vmatprep.subr.mxu0 0.0
  %59 = vmatpush2.msra.mxu0 0.0
  %60 = vmatprep.subr.mxu0 0.0
  %61 = vmatpush2.msra.mxu0 0.0
  %62 = vmatprep.subr.mxu0 0.0
  %63 = vmatpush2.msra.mxu0 0.0
  %64 = vmatprep.subr.mxu0 0.0
  %65 = vmatpush2.msra.mxu0 0.0
  %66 = vmatprep.subr.mxu0 0.0
  %67 = vmatpush2.msra.mxu0 0.0
  %68 = vmatprep.subr.mxu0 0.0
  %69 = vmatpush2.msra.mxu0 0.0
  %70 = vmatprep.subr.mxu0 0.0
  %71 = vmatpush2.msra.mxu0 0.0
  %72 = vmatprep.subr.mxu0 0.0
  %73 = vmatpush2.msra.mxu0 0.0
  %74 = vmatprep.subr.mxu0 0.0
  %75 = vmatpush2.msra.mxu0 0.0
  %76 = vmatprep.subr.mxu0 0.0
  %77 = vmatpush2.msra.mxu0 0.0
  %78 = vmatprep.subr.mxu0 0.0
  %79 = vmatpush2.msra.mxu0 0.0
  %80 = vmatprep.subr.mxu0 0.0
  %81 = vmatpush2.msra.mxu0 0.0
  %82 = vmatprep.subr.mxu0 0.0
  %83 = vmatpush2.msra.mxu0 0.0
  %84 = vmatprep.subr.mxu0 0.0
  %85 = vmatpush2.msra.mxu0 0.0
  %86 = vmatprep.mubr.f32.mxu0 0.0
  %87 = vmatmul.mubr.f32.gmra.mxu0 %v20
  %v88 = vpop.f32.mrf.mxu0
  %v89 = vadd.f32 0.0, %v88
  %v90 = vpop.f32.mrf.mxu0
  %v91 = vadd.f32 0.0, %v90
  %92 = vdwg.mxu0
  %93 = vmatprep.subr.mxu0 0.0
  %94 = vmatpush1.msra.mxu0 0.0
  %95 = vmatprep.subr.mxu0 0.0
  %96 = vmatpush1.msra.mxu0 0.0
  %97 = vmatprep.subr.mxu0 0.0
  %98 = vmatpush1.msra.mxu0 0.0
  %99 = vmatprep.subr.mxu0 0.0
  %100 = vmatpush1.msra.mxu0 0.0
  %101 = vmatprep.subr.mxu0 0.0
  %102 = vmatpush1.msra.mxu0 0.0
  %103 = vmatprep.subr.mxu0 0.0
  %104 = vmatpush1.msra.mxu0 0.0
  %105 = vmatprep.subr.mxu0 0.0
  %106 = vmatpush1.msra.mxu0 0.0
  %107 = vmatprep.subr.mxu0 0.0
  %108 = vmatpush1.msra.mxu0 0.0
  %109 = vmatprep.subr.mxu0 0.0
  %110 = vmatpush1.msra.mxu0 0.0
  %111 = vmatprep.subr.mxu0 0.0
  %112 = vmatpush1.msra.mxu0 0.0
  %113 = vmatprep.subr.mxu0 0.0
  %114 = vmatpush1.msra.mxu0 0.0
  %115 = vmatprep.subr.mxu0 0.0
  %116 = vmatpush1.msra.mxu0 0.0
  %117 = vmatprep.subr.mxu0 0.0
  %118 = vmatpush1.msra.mxu0 0.0
  %119 = vmatprep.subr.mxu0 0.0
  %120 = vmatpush1.msra.mxu0 0.0
  %121 = vmatprep.subr.mxu0 0.0
  %122 = vmatpush1.msra.mxu0 0.0
  %123 = vmatprep.subr.mxu0 0.0
  %124 = vmatpush1.msra.mxu0 %v17
  %125 = vmatprep.subr.mxu0 0.0
  %126 = vmatpush2.msra.mxu0 0.0
  %127 = vmatprep.subr.mxu0 0.0
  %128 = vmatpush2.msra.mxu0 0.0
  %129 = vmatprep.subr.mxu0 0.0
  %130 = vmatpush2.msra.mxu0 0.0
  %131 = vmatprep.subr.mxu0 0.0
  %132 = vmatpush2.msra.mxu0 0.0
  %133 = vmatprep.subr.mxu0 0.0
  %134 = vmatpush2.msra.mxu0 0.0
  %135 = vmatprep.subr.mxu0 0.0
  %136 = vmatpush2.msra.mxu0 0.0
  %137 = vmatprep.subr.mxu0 0.0
  %138 = vmatpush2.msra.mxu0 0.0
  %139 = vmatprep.subr.mxu0 0.0
  %140 = vmatpush2.msra.mxu0 0.0
  %141 = vmatprep.subr.mxu0 0.0
  %142 = vmatpush2.msra.mxu0 0.0
  %143 = vmatprep.subr.mxu0 0.0
  %144 = vmatpush2.msra.mxu0 0.0
  %145 = vmatprep.subr.mxu0 0.0
  %146 = vmatpush2.msra.mxu0 0.0
  %147 = vmatprep.subr.mxu0 0.0
  %148 = vmatpush2.msra.mxu0 0.0
  %149 = vmatprep.subr.mxu0 0.0
  %150 = vmatpush2.msra.mxu0 0.0
  %151 = vmatprep.subr.mxu0 0.0
  %152 = vmatpush2.msra.mxu0 0.0
  %153 = vmatprep.subr.mxu0 0.0
  %154 = vmatpush2.msra.mxu0 0.0
  %155 = vmatprep.subr.mxu0 0.0
  %156 = vmatpush2.msra.mxu0 0.0
  %157 = vmatprep.mubr.f32.mxu0 0.0
  %158 = vmatmul.mubr.f32.gmra.mxu0 %v20
  %v159 = vpop.f32.mrf.mxu0
  %v160 = vadd.f32 0.0, %v159
  %v161 = vpop.f32.mrf.mxu0
  %162 = vdwg.mxu0
  %v163 = vadd.f32 %v89, 1e-08
  %v164 = vsub.f32 1.0, %v13
  %v165 = vmul.f32 %v13, %v163
  %166 = vadd.xlane.f32.xlu0 %v165
  %v167 = vpop.xlane.xlu0 %166
  %v168 = vsub.f32 1.0, %v167
  %v169 = vrcp.pop %v167
  %v170 = vmul.f32 1.0, %v169
  %v171 = vmul.f32 %v164, %v163
  %v172 = vadd.f32 %v168, 1e-08
  %v173 = vrcp.pop %v172
  %v174 = vmul.f32 %v171, %v173
  %v175 = vsub.f32 %v170, 1.0
  %v176 = vmul.f32 %v175, %v174
  %v177 = vadd.f32 %v13, 1e-08
  %v178 = vmul.f32 %v89, %v177
  %179 = vadd.xlane.f32.xlu0 %v178
  %v180 = vpop.xlane.xlu0 %179
  %v181 = vrcp.pop %v180
  %v182 = vmul.f32 %v178, %v181
  %v183 = vadd.f32 %v182, 1e-08
  %v184 = vlog2.pop %v183
  %v185 = vmul.f32 %v184, 0.6931472
  %v186 = vsub.f32 1.0, %v91
  %v187 = vmul.f32 %v91, %v12
  %188 = vadd.xlane.f32.xlu0 %v187
  %v189 = vpop.xlane.xlu0 %188
  %v190 = vsub.f32 1.0, %v189
  %v191 = vmul.f32 %v176, %v160
  %v192 = vmul.f32 %v191, %v91
  %v193 = vmul.f32 %v191, %v186
  %v194 = vsub.f32 1.0, %v14
  %v195 = vmul.f32 %v12, %v160
  %196 = vadd.xlane.f32.xlu0 %v191
  %v197 = vpop.xlane.xlu0 %196
  %198 = vadd.xlane.f32.xlu0 %v192
  %v199 = vpop.xlane.xlu0 %198
  %200 = vadd.xlane.f32.xlu0 %v193
  %v201 = vpop.xlane.xlu0 %200
  %202 = vadd.xlane.f32.xlu0 %v195
  %v203 = vpop.xlane.xlu0 %202
  %205 = vset.pattern.permute.xlu0 1
  %206 = vperm.xlu0 %205, %v14
  %v207 = vpop.permute.xlu0 %206
  %v209 = vmul.f32 %v207, %v195
  %210 = vadd.xlane.f32.xlu0 %v209
  %v211 = vpop.xlane.xlu0 %210
  %213 = vset.pattern.permute.xlu0 1
  %214 = vperm.xlu0 %213, %v194
  %v215 = vpop.permute.xlu0 %214
  %v217 = vmul.f32 %v215, %v195
  %218 = vadd.xlane.f32.xlu0 %v217
  %v219 = vpop.xlane.xlu0 %218
  %v220 = vadd.f32 %v190, 1e-08
  %v221 = vlog2.pop %v220
  %v222 = vmul.f32 %v221, 0.6931472
  %v223 = vadd.f32 %v189, 1e-08
  %v224 = vlog2.pop %v223
  %v225 = vmul.f32 %v224, 0.6931472
  %v226 = vmul.f32 %v14, %v201
  %v227 = vmul.f32 %v14, %v219
  %229 = vrot.lane.b32.xlu0 %v226, 2
  %v230 = vpop.permute.xlu0 %229
  %233 = vrot.lane.b32.xlu0 %v227, 6
  %v234 = vpop.permute.xlu0 %233
  %vm236 = vcmask 7168
  %v237 = vsel %vm236, %v222, %v225
  %vm238 = vcmask 15360
  %v239 = vsel %vm238, %v237, %v230
  %vm240 = vcmask 23552
  %v241 = vsel %vm240, %v239, %v199
  %vm242 = vcmask 31744
  %v243 = vsel %vm242, %v241, %v201
  %vm244 = vcmask 39936
  %v245 = vsel %vm244, %v243, %v197
  %vm246 = vcmask 48128
  %v247 = vsel %vm246, %v245, %v234
  %vm248 = vcmask 56320
  %v249 = vsel %vm248, %v247, %v211
  %v250 = vsel %vm18, %v249, %v219
  %vm251 = vcmask 72704
  %v252 = vsel %vm251, %v250, %v203
  %vm253 = vcmask 80896
  %v254 = vsel %vm253, %v252, %v170
  %vm255 = vcmask 89088
  %v256 = vsel %vm255, %v254, 0.0
  %257 = vst [vmem:[%s2] sm:$0xff] %v182
  %258 = vst [vmem:[%s2 + $0x8] sm:$0xff] %v185
  %259 = vst [vmem:[%s2 + $0x10] sm:$0xff] %v256
  // Predicated region
  $region10: #{safetynet_v46_forward.1} parent=0 // pred_check
    _
  $region11: #{safetynet_v46_forward.1} parent=0 // pred_check_branch
    %261 = sbr.rel (0) target = $region13
  $region12: #{safetynet_v46_forward.1} parent=0 // pred_region
    _
  $region13: #{safetynet_v46_forward.1} parent=0 // pred_fallthru
    _
  // Predicated region
  $region14: #{safetynet_v46_forward.1} parent=0 // pred_check
    _
  $region15: #{safetynet_v46_forward.1} parent=0 // pred_check_branch
    %263 = sbr.rel (0) target = $region17
  $region16: #{safetynet_v46_forward.1} parent=0 // pred_region
    _
  $region17: #{safetynet_v46_forward.1} parent=0 // pred_fallthru
    _

</llo_original>
